<compile_context>
chip_gen: v7x
topology: tpu7x:2x2x1
jax: 0.10.0
libtpu: 0.0.40
codegen_flags: <defaults>
</compile_context>

<pallas_src>
import functools

import numpy as np
import jax
import jax.numpy as jnp
from jax.experimental import pallas as pl
from jax.experimental.pallas import tpu as pltpu

MARGIN = 8.0          # self.margin in the PyTorch module
EPS_NORM = 1e-12      # F.normalize eps
EPS_PD = 1e-6         # F.pairwise_distance eps (added to the difference)


def _pp_loss_kernel(f_ref, pullw_ref, pushw_ref, out_ref, *, d_real):
    """One grid step == one component (all of its sub-components at once)."""
    f = f_ref[0].astype(jnp.float32)          # (C_pad, D_pad), native dtype in
    pull_w = pullw_ref[0]                     # (S_pad, C_pad) f32, rows sum to 1
    push_w = pushw_ref[0]                     # (S_pad, C_pad) f32, rows sum to 1 or 0
    d_pad = f.shape[1]

    # F.normalize(f): x / max(||x||, 1e-12) == x * rsqrt(max(||x||^2, 1e-24)).
    # Zero (padded) rows stay exactly zero.
    sumsq = jnp.sum(f * f, axis=1, keepdims=True)
    f = f * jax.lax.rsqrt(jnp.maximum(sumsq, EPS_NORM * EPS_NORM))

    # All centroids of this component's sub-components in one MXU matmul; the
    # pull weights are pre-scaled by 1/|lin| so this is already the mean.
    k = jnp.dot(pull_w, f, preferred_element_type=jnp.float32)   # (S_pad, D_pad)

    # pairwise_distance adds eps to the difference; apply it only on the real
    # feature columns so the D-padding does not leak into the L1/L2 norms.
    col = jax.lax.broadcasted_iota(jnp.int32, (1, 1, d_pad), 2)
    eps = jnp.where(col < d_real, EPS_PD, 0.0)
    diff = f[None, :, :] - k[:, None, :] + eps                   # (S_pad, C_pad, D_pad)

    dist_l2 = jnp.sqrt(jnp.sum(diff * diff, axis=-1))            # (S_pad, C_pad)
    dist_l1 = jnp.sum(jnp.abs(diff), axis=-1)                    # (S_pad, C_pad)
    hinge = jnp.maximum(MARGIN - dist_l1, 0.0)

    # Weights already carry 1/count and are zero for padded rows / padded
    # sub-components / empty complements -> these are per-component partial
    # sums of the per-sub-component pull / push means.
    pos_c = jnp.sum(pull_w * dist_l2)
    neg_c = jnp.sum(push_w * hinge)
    # TODO(synk): the torch.isnan guard on the push term is not reproduced; it
    # only fires for NaN inputs (empty complements are already excluded by the
    # host-side validity count).

    lane = jax.lax.broadcasted_iota(jnp.int32, (1, 128), 1)
    out_ref[0] = (jnp.where(lane == 0, pos_c, 0.0)
                  + jnp.where(lane == 1, neg_c, 0.0))


def _round_up(x, m):
    return ((x + m - 1) // m) * m


@functools.lru_cache(maxsize=64)
def _build_static(cts, sub_comp_idx, d_real):
    """Host-side, memoized: flatten the ragged structure into dense, padded,
    pre-scaled per-component weight tensors + gather indices."""
    n_comp = len(cts)
    c_max = max(cts)
    s_max = max((len(sc) for sc in sub_comp_idx), default=0)
    C_pad = _round_up(max(c_max, 1), 8)          # sublane alignment (f32)
    D_pad = _round_up(max(d_real, 1), 128)       # lane alignment
    S_pad = _round_up(max(s_max, 1), 8)

    gather_idx = np.zeros((n_comp, C_pad), np.int32)
    row_valid = np.zeros((n_comp, C_pad), np.float32)
    pull_w = np.zeros((n_comp, S_pad, C_pad), np.float32)
    push_w = np.zeros((n_comp, S_pad, C_pad), np.float32)

    n_sub = 0
    n_valid = 0
    start = 0
    for cix, c in enumerate(cts):
        gather_idx[cix, :c] = np.arange(start, start + c, dtype=np.int32)
        row_valid[cix, :c] = 1.0
        for six, lin in enumerate(sub_comp_idx[cix]):
            n_sub += 1
            lin_arr = np.asarray(lin, np.int64)
            if lin_arr.size > 0:
                pull_w[cix, six, lin_arr] = 1.0 / lin_arr.size
            # TODO(synk): empty `lin` -> torch's mean over an empty selection is
            # NaN; here it contributes 0 to the pull mean (degenerate case).
            in_lin = np.zeros((c,), bool)
            in_lin[lin_arr] = True
            compl_rows = np.nonzero(~in_lin)[0]
            if compl_rows.size > 0:
                push_w[cix, six, compl_rows] = 1.0 / compl_rows.size
                n_valid += 1
        start += c

    return dict(C_pad=C_pad, D_pad=D_pad, S_pad=S_pad,
                gather_idx=gather_idx, row_valid=row_valid,
                pull_w=pull_w, push_w=push_w,
                n_sub=n_sub, n_valid=n_valid)


def _static_key(cts, sub_comp_idx):
    return (tuple(int(c) for c in cts),
            tuple(tuple(tuple(int(i) for i in lin) for lin in sc)
                  for sc in sub_comp_idx))


def pp_loss(feats, cts, sub_comp_idx):
    """Returns (mean pull loss, mean push loss) like PPLoss.forward."""
    cts_key, sci_key = _static_key(cts, sub_comp_idx)
    n_rows, d_real = feats.shape
    if len(cts_key) == 0:
        z = jnp.zeros((), jnp.float32)
        return z, z
    st = _build_static(cts_key, sci_key, int(d_real))
    if st["n_sub"] == 0:                         # "0 pos" path of the module
        z = jnp.zeros((), jnp.float32)
        return z, z

    n_comp = len(cts_key)
    C_pad, D_pad, S_pad = st["C_pad"], st["D_pad"], st["S_pad"]

    # Device-side packing of components into (n_comp, C_pad, D_pad), keeping
    # feats in their native dtype (cast to f32 happens inside the kernel).
    fp = feats
    if D_pad != d_real:
        fp = jnp.pad(fp, ((0, 0), (0, D_pad - d_real)))
    packed = fp[jnp.asarray(st["gather_idx"])]                       # gather rows
    packed = packed * jnp.asarray(st["row_valid"])[:, :, None].astype(packed.dtype)
    pull_w = jnp.asarray(st["pull_w"])
    push_w = jnp.asarray(st["push_w"])

    # Per-step VMEM budget: double-buffered input/output blocks + in-kernel
    # f32 temporaries (f, k, and ~4 diff-slab sized intermediates) + headroom.
    itemsize = packed.dtype.itemsize
    blocks = C_pad * D_pad * itemsize + 2 * S_pad * C_pad * 4 + 128 * 4
    temps = (C_pad + S_pad) * D_pad * 4 + 4 * S_pad * C_pad * D_pad * 4
    vmem_need = 2 * blocks + temps + (2 << 20)
    vmem_limit = int(min(max(32 << 20, vmem_need), 48 << 20))  # < v7x 64 MiB phys

    kernel = functools.partial(_pp_loss_kernel, d_real=int(d_real))
    out = pl.pallas_call(
        kernel,
        out_shape=jax.ShapeDtypeStruct((n_comp, 1, 128), jnp.float32),
        grid_spec=pltpu.PrefetchScalarGridSpec(
            num_scalar_prefetch=0,
            grid=(n_comp,),
            in_specs=[
                pl.BlockSpec((1, C_pad, D_pad), lambda c: (c, 0, 0)),
                pl.BlockSpec((1, S_pad, C_pad), lambda c: (c, 0, 0)),
                pl.BlockSpec((1, S_pad, C_pad), lambda c: (c, 0, 0)),
            ],
            out_specs=pl.BlockSpec((1, 1, 128), lambda c: (c, 0, 0)),
        ),
        compiler_params=pltpu.CompilerParams(
            dimension_semantics=("parallel",),     # v7x: split components over 2 TCs
            vmem_limit_bytes=vmem_limit,
        ),
    )(packed, pull_w, push_w)

    # Tiny static-shaped reduction of the per-component partial sums in JAX
    # (keeps the grid axis fully parallel). Counts are static host ints.
    pos_mean = jnp.sum(out[:, 0, 0]) / float(st["n_sub"])
    neg_mean = jnp.sum(out[:, 0, 1]) / float(max(st["n_valid"], 1))
    return pos_mean, neg_mean


def pp_loss_reference(feats, cts, sub_comp_idx, margin=MARGIN):
    """Host reference that mirrors the PyTorch loops exactly (numpy)."""
    feats = np.asarray(feats, np.float32)
    pos, neg = [], []
    start = 0
    for cix, c in enumerate(cts):
        f = feats[start:start + c]
        norm = np.maximum(np.linalg.norm(f, axis=1, keepdims=True), EPS_NORM)
        f = f / norm
        for lin in sub_comp_idx[cix]:
            ix_ = sorted(set(range(c)) - set(lin))
            pull = f[list(lin)]
            k = pull.mean(axis=0)
            d = pull - k + EPS_PD
            pos.append(np.sqrt((d * d).sum(axis=1)).mean())
            push = f[ix_]
            if push.shape[0] > 0:
                r_ = np.abs(push - k + EPS_PD).sum(axis=1)
                r__ = np.maximum(margin - r_, 0.0).mean()
                if not np.isnan(r__):
                    neg.append(r__)
        start += c
    pos_m = float(np.mean(pos)) if len(pos) > 0 else 0.0
    neg_m = float(np.mean(neg)) if len(neg) > 0 else 0.0
    return pos_m, neg_m


if __name__ == "__main__":
    key = jax.random.PRNGKey(0)

    # Small, deterministic ragged example: 3 components, 5 sub-components.
    cts = [6, 5, 5]
    sub_comp_idx = [
        [[0, 1, 2], [3, 4]],      # component 0 (6 rows)
        [[0, 1], [2, 3, 4]],      # component 1 (5 rows)
        [[0, 1, 2, 3, 4]],        # component 2 (5 rows): empty complement -> no push term
    ]
    N, D = sum(cts), 32
    feats = jax.random.normal(key, (N, D), dtype=jnp.float32)

    pos, neg = pp_loss(feats, cts, sub_comp_idx)
    pos, neg = jax.block_until_ready((pos, neg))

    ref_pos, ref_neg = pp_loss_reference(np.asarray(feats), cts, sub_comp_idx)
    np.testing.assert_allclose(float(pos), ref_pos, rtol=1e-4, atol=1e-4)
    np.testing.assert_allclose(float(neg), ref_neg, rtol=1e-4, atol=1e-4)

    print("KERNEL_OK")
</pallas_src>

<mosaic_0001>
module attributes {stable_mosaic.version = 11 : i64} {
  func.func @_pp_loss_kernel(%arg0: i32, %arg1: memref<1x8x128xf32, #tpu.memory_space<vmem>>, %arg2: memref<1x8x8xf32, #tpu.memory_space<vmem>>, %arg3: memref<1x8x8xf32, #tpu.memory_space<vmem>>, %arg4: memref<1x1x128xf32, #tpu.memory_space<vmem>>) attributes {dimension_semantics = [#tpu.dimension_semantics<parallel>], iteration_bounds = array<i64: 3>, scalar_prefetch = 0 : i64, scratch_operands = 0 : i64, tpu.core_type = #tpu.core_type<tc>, window_params = [{transform_indices = @transform_0, window_bounds = array<i64: 1, 8, 128>}, {transform_indices = @transform_1, window_bounds = array<i64: 1, 8, 8>}, {transform_indices = @transform_2, window_bounds = array<i64: 1, 8, 8>}, {transform_indices = @transform_3, window_bounds = array<i64: 1, 1, 128>}]} {
    %c0 = arith.constant 0 : index
    %c0_0 = arith.constant 0 : index
    %c0_1 = arith.constant 0 : index
    %0 = vector.load %arg1[%c0, %c0_0, %c0_1] : memref<1x8x128xf32, #tpu.memory_space<vmem>>, vector<1x8x128xf32>
    %1 = vector.shape_cast %0 : vector<1x8x128xf32> to vector<8x128xf32>
    %c0_2 = arith.constant 0 : index
    %c0_3 = arith.constant 0 : index
    %c0_4 = arith.constant 0 : index
    %2 = vector.load %arg2[%c0_2, %c0_3, %c0_4] : memref<1x8x8xf32, #tpu.memory_space<vmem>>, vector<1x8x8xf32>
    %3 = vector.shape_cast %2 : vector<1x8x8xf32> to vector<8x8xf32>
    %c0_5 = arith.constant 0 : index
    %c0_6 = arith.constant 0 : index
    %c0_7 = arith.constant 0 : index
    %4 = vector.load %arg3[%c0_5, %c0_6, %c0_7] : memref<1x8x8xf32, #tpu.memory_space<vmem>>, vector<1x8x8xf32>
    %5 = vector.shape_cast %4 : vector<1x8x8xf32> to vector<8x8xf32>
    %6 = arith.mulf %1, %1 : vector<8x128xf32>
    %cst = arith.constant dense<0.000000e+00> : vector<8xf32>
    %7 = vector.multi_reduction <add>, %6, %cst [1] : vector<8x128xf32> to vector<8xf32>
    %8 = vector.shape_cast %7 : vector<8xf32> to vector<8x1xf32>
    %cst_8 = arith.constant 1.000000e-24 : f32
    %9 = vector.broadcast %cst_8 : f32 to vector<8x1xf32>
    %10 = arith.maximumf %8, %9 : vector<8x1xf32>
    %11 = math.rsqrt %10 : vector<8x1xf32>
    %12 = vector.broadcast %11 : vector<8x1xf32> to vector<8x128xf32>
    %13 = arith.mulf %1, %12 : vector<8x128xf32>
    %cst_9 = arith.constant dense<0.000000e+00> : vector<8x128xf32>
    %14 = tpu.matmul %3, %13, %cst_9 {dimension_numbers = #tpu.dot_dimension_numbers<[1], [0], [0], [1], [0, 0, 1, 1], [], []>} : vector<8x8xf32>, vector<8x128xf32>, vector<8x128xf32> -> vector<8x128xf32>
    %15 = tpu.iota {dimensions = array<i32: 2>} : vector<1x1x128xi32>
    %c32_i32 = arith.constant 32 : i32
    %16 = vector.broadcast %c32_i32 : i32 to vector<1x1x128xi32>
    %17 = arith.cmpi slt, %15, %16 : vector<1x1x128xi32>
    %cst_10 = arith.constant 9.99999997E-7 : f32
    %cst_11 = arith.constant 0.000000e+00 : f32
    %18 = vector.broadcast %cst_10 : f32 to vector<1x1x128xf32>
    %19 = vector.broadcast %cst_11 : f32 to vector<1x1x128xf32>
    %20 = arith.select %17, %18, %19 : vector<1x1x128xi1>, vector<1x1x128xf32>
    %21 = vector.shape_cast %13 : vector<8x128xf32> to vector<1x8x128xf32>
    %22 = vector.shape_cast %14 : vector<8x128xf32> to vector<8x1x128xf32>
    %23 = vector.broadcast %21 : vector<1x8x128xf32> to vector<8x8x128xf32>
    %24 = vector.broadcast %22 : vector<8x1x128xf32> to vector<8x8x128xf32>
    %25 = arith.subf %23, %24 : vector<8x8x128xf32>
    %26 = vector.broadcast %20 : vector<1x1x128xf32> to vector<8x8x128xf32>
    %27 = arith.addf %25, %26 : vector<8x8x128xf32>
    %28 = arith.mulf %27, %27 : vector<8x8x128xf32>
    %cst_12 = arith.constant dense<0.000000e+00> : vector<8x8xf32>
    %29 = vector.multi_reduction <add>, %28, %cst_12 [2] : vector<8x8x128xf32> to vector<8x8xf32>
    %30 = math.sqrt %29 : vector<8x8xf32>
    %31 = math.absf %27 : vector<8x8x128xf32>
    %cst_13 = arith.constant dense<0.000000e+00> : vector<8x8xf32>
    %32 = vector.multi_reduction <add>, %31, %cst_13 [2] : vector<8x8x128xf32> to vector<8x8xf32>
    %cst_14 = arith.constant 8.000000e+00 : f32
    %33 = vector.broadcast %cst_14 : f32 to vector<8x8xf32>
    %34 = arith.subf %33, %32 : vector<8x8xf32>
    %cst_15 = arith.constant 0.000000e+00 : f32
    %35 = vector.broadcast %cst_15 : f32 to vector<8x8xf32>
    %36 = arith.maximumf %34, %35 : vector<8x8xf32>
    %37 = arith.mulf %3, %30 : vector<8x8xf32>
    %38 = vector.shape_cast %37 : vector<8x8xf32> to vector<1x8x8xf32>
    %cst_16 = arith.constant dense<0.000000e+00> : vector<1xf32>
    %39 = vector.multi_reduction <add>, %38, %cst_16 [1, 2] : vector<1x8x8xf32> to vector<1xf32>
    %40 = vector.shape_cast %39 : vector<1xf32> to vector<1x1x1xf32>
    %41 = vector.extract %40[0, 0, 0] : f32 from vector<1x1x1xf32>
    %42 = arith.mulf %5, %36 : vector<8x8xf32>
    %43 = vector.shape_cast %42 : vector<8x8xf32> to vector<1x8x8xf32>
    %cst_17 = arith.constant dense<0.000000e+00> : vector<1xf32>
    %44 = vector.multi_reduction <add>, %43, %cst_17 [1, 2] : vector<1x8x8xf32> to vector<1xf32>
    %45 = vector.shape_cast %44 : vector<1xf32> to vector<1x1x1xf32>
    %46 = vector.extract %45[0, 0, 0] : f32 from vector<1x1x1xf32>
    %47 = tpu.iota {dimensions = array<i32: 1>} : vector<1x128xi32>
    %c0_i32 = arith.constant 0 : i32
    %48 = vector.broadcast %c0_i32 : i32 to vector<1x128xi32>
    %49 = arith.cmpi eq, %47, %48 : vector<1x128xi32>
    %cst_18 = arith.constant 0.000000e+00 : f32
    %50 = vector.broadcast %41 : f32 to vector<1x128xf32>
    %51 = vector.broadcast %cst_18 : f32 to vector<1x128xf32>
    %52 = arith.select %49, %50, %51 : vector<1x128xi1>, vector<1x128xf32>
    %c1_i32 = arith.constant 1 : i32
    %53 = vector.broadcast %c1_i32 : i32 to vector<1x128xi32>
    %54 = arith.cmpi eq, %47, %53 : vector<1x128xi32>
    %cst_19 = arith.constant 0.000000e+00 : f32
    %55 = vector.broadcast %46 : f32 to vector<1x128xf32>
    %56 = vector.broadcast %cst_19 : f32 to vector<1x128xf32>
    %57 = arith.select %54, %55, %56 : vector<1x128xi1>, vector<1x128xf32>
    %58 = arith.addf %52, %57 : vector<1x128xf32>
    %c0_20 = arith.constant 0 : index
    %c0_21 = arith.constant 0 : index
    %c0_22 = arith.constant 0 : index
    %59 = vector.load %arg4[%c0_20, %c0_21, %c0_22] : memref<1x1x128xf32, #tpu.memory_space<vmem>>, vector<1x1x128xf32>
    %60 = vector.shape_cast %59 : vector<1x1x128xf32> to vector<1x128xf32>
    %61 = vector.shape_cast %58 : vector<1x128xf32> to vector<1x1x128xf32>
    tpu.vector_store %arg4[%c0_20, %c0_21, %c0_22], %61 {strides = array<i32>} : memref<1x1x128xf32, #tpu.memory_space<vmem>>, vector<1x1x128xf32>,
    return
  }
  func.func @transform_0(%arg0: i32) -> (i32, i32, i32) {
    %c0_i32 = arith.constant 0 : i32
    %c0_i32_0 = arith.constant 0 : i32
    %c0_i32_1 = arith.constant 0 : i32
    return %arg0, %c0_i32, %c0_i32_0 : i32, i32, i32
  }
  func.func @transform_1(%arg0: i32) -> (i32, i32, i32) {
    %c0_i32 = arith.constant 0 : i32
    %c0_i32_0 = arith.constant 0 : i32
    %c0_i32_1 = arith.constant 0 : i32
    return %arg0, %c0_i32, %c0_i32_0 : i32, i32, i32
  }
  func.func @transform_2(%arg0: i32) -> (i32, i32, i32) {
    %c0_i32 = arith.constant 0 : i32
    %c0_i32_0 = arith.constant 0 : i32
    %c0_i32_1 = arith.constant 0 : i32
    return %arg0, %c0_i32, %c0_i32_0 : i32, i32, i32
  }
  func.func @transform_3(%arg0: i32) -> (i32, i32, i32) {
    %c0_i32 = arith.constant 0 : i32
    %c0_i32_0 = arith.constant 0 : i32
    %c0_i32_1 = arith.constant 0 : i32
    return %arg0, %c0_i32, %c0_i32_0 : i32, i32, i32
  }
}

</mosaic_0001>

<llo_original>
// kernel: tpu_custom_call.1
$region0: #{tpu_custom_call.1}
  #allocation0 [shape = 'u32[]', space=smem, size = 0x4, offset = 0x4, fixed_abs, tag = 'smem constant byte address 0x4 - core index']
  #allocation1 [shape = 'u32[144,128]{1,0:T(1,128)}', space=vmem, size = 0x12000, scoped, tag = 'internal scratch']
  %s0 = inlined_call_operand.hbm [shape: f32[3,8,128], index: 0, kind: input, shape index: {}]
  %s1 = inlined_call_operand.hbm [shape: f32[3,8,8], index: 1, kind: input, shape index: {}]
  %s2 = inlined_call_operand.hbm [shape: f32[3,8,8], index: 2, kind: input, shape index: {}]
  %s3 = inlined_call_operand.hbm [shape: f32[3,1,128], index: 3, kind: output, shape index: {}]
  %s4 = sld [smem:[#allocation0]]
  $region57: #{tpu_custom_call.1} parent=0
    _
  %s6 = ssub.s32 1, %s4
  %s7 = scalar_select 0, %s6, %s4
  $region1: #{tpu_custom_call.1} parent=0
    #allocation2 [shape = 'u8[8192]{0}', space=vmem, size = 0x2000, scoped, tag = 'input window, operand 0']
    #allocation3 [shape = 's32[2]{0}', space=sflag, size = 0x8, scoped, tag = 'scoped memory for tpu_custom_call.1']
    #allocation4 [shape = 's32[2]{0}', space=sflag, size = 0x8, scoped, tag = 'scoped memory for tpu_custom_call.1']
    #allocation5 [shape = 'u8[8192]{0}', space=vmem, size = 0x2000, scoped, tag = 'input window, operand 1']
    #allocation6 [shape = 's32[2]{0}', space=sflag, size = 0x8, scoped, tag = 'scoped memory for tpu_custom_call.1']
    #allocation7 [shape = 'u8[8192]{0}', space=vmem, size = 0x2000, scoped, tag = 'input window, operand 2']
    #allocation8 [shape = 'u8[1024]{0}', space=vmem, size = 0x400, scoped, tag = 'output window, operand 0']
    %8 = vsyncpa [#allocation3], 0
    %s9 = scalar_lea.sflag [#allocation3], 1
    %10 = vsyncpa %s9, 0
    %11 = vsyncpa [#allocation6], 0
    %s12 = scalar_lea.sflag [#allocation6], 1
    %13 = vsyncpa %s12, 0
    %14 = vsyncpa [#allocation4], 0
    %s15 = scalar_lea.sflag [#allocation4], 1
    %16 = vsyncpa %s15, 0
    loop: start=0, step=1, limit=5
    $region2: #{tpu_custom_call.1} parent=1 // loop_pre_header
      _
    $region3: #{tpu_custom_call.1} parent=1 // loop_header
      %s18 = sphi 0, %s22
      %p19 = scmp.ge.s32.totalorder %s18, 5
      %s28 = sphi 0, %s30
      %s31 = sphi 0, %s28
      %s32 = sphi 0, %s31
      %s48 = sphi 0, %s32
      %s54 = sphi 0, %s56
      %s57 = sphi 0, %s54
      %s58 = sphi 0, %s57
      %s74 = sphi 0, %s58
      %s80 = sphi 0, %s82
      %s83 = sphi 0, %s80
      %s84 = sphi 0, %s83
      %s100 = sphi 0, %s84
      %s106 = sphi 0, %s108
      %s109 = sphi 0, %s106
      %s110 = sphi 0, %s109
      %s126 = sphi 0, %s110
    $region4: #{tpu_custom_call.1} parent=1 // loop_header_branch
      %21 = sbr.rel (%p19) target = $region8
    $region5: #{tpu_custom_call.1} parent=1 // loop_body
      %s23 = ssub.s32 %s18, 1
      %s24 = ssub.s32 %s18, 2
      %s25 = sadd.s32 %s18, 1
      %s26 = ssub.s32 %s18, %s25
      %p27 = scmp.eq.s32.totalorder %s26, 0
      %s29 = sadd.s32 %s28, 1
      %s30 = scalar_select %p27, %s28, %s29
      %p33 = pneg %p27
      %p34 = scmp.eq.s32.totalorder %s18, 2
      %p35 = por %p33, %p34
      %p36 = scmp.ne.s32.totalorder %s28, %s31
      %p37 = scmp.eq.s32.totalorder %s18, 0
      %p38 = por %p36, %p37
      %p39 = scmp.ne.s32.totalorder %s28, %s31
      %p40 = scmp.eq.s32.totalorder %s23, 2
      %p41 = por %p39, %p40
      %p42 = scmp.ne.s32.totalorder %s31, %s32
      %p43 = scmp.eq.s32.totalorder %s23, 0
      %p44 = por %p42, %p43
      %p45 = scmp.ne.s32.totalorder %s31, %s32
      %p46 = scmp.eq.s32.totalorder %s24, 2
      %p47 = por %p45, %p46
      %p49 = scmp.ne.s32.totalorder %s32, %s48
      %p50 = scmp.eq.s32.totalorder %s24, 0
      %p51 = por %p49, %p50
      %s52 = ssub.s32 %s18, %s25
      %p53 = scmp.eq.s32.totalorder %s52, 0
      %s55 = sadd.s32 %s54, 1
      %s56 = scalar_select %p53, %s54, %s55
      %p59 = pneg %p53
      %p60 = scmp.eq.s32.totalorder %s18, 2
      %p61 = por %p59, %p60
      %p62 = scmp.ne.s32.totalorder %s54, %s57
      %p63 = scmp.eq.s32.totalorder %s18, 0
      %p64 = por %p62, %p63
      %p65 = scmp.ne.s32.totalorder %s54, %s57
      %p66 = scmp.eq.s32.totalorder %s23, 2
      %p67 = por %p65, %p66
      %p68 = scmp.ne.s32.totalorder %s57, %s58
      %p69 = scmp.eq.s32.totalorder %s23, 0
      %p70 = por %p68, %p69
      %p71 = scmp.ne.s32.totalorder %s57, %s58
      %p72 = scmp.eq.s32.totalorder %s24, 2
      %p73 = por %p71, %p72
      %p75 = scmp.ne.s32.totalorder %s58, %s74
      %p76 = scmp.eq.s32.totalorder %s24, 0
      %p77 = por %p75, %p76
      %s78 = ssub.s32 %s18, %s25
      %p79 = scmp.eq.s32.totalorder %s78, 0
      %s81 = sadd.s32 %s80, 1
      %s82 = scalar_select %p79, %s80, %s81
      %p85 = pneg %p79
      %p86 = scmp.eq.s32.totalorder %s18, 2
      %p87 = por %p85, %p86
      %p88 = scmp.ne.s32.totalorder %s80, %s83
      %p89 = scmp.eq.s32.totalorder %s18, 0
      %p90 = por %p88, %p89
      %p91 = scmp.ne.s32.totalorder %s80, %s83
      %p92 = scmp.eq.s32.totalorder %s23, 2
      %p93 = por %p91, %p92
      %p94 = scmp.ne.s32.totalorder %s83, %s84
      %p95 = scmp.eq.s32.totalorder %s23, 0
      %p96 = por %p94, %p95
      %p97 = scmp.ne.s32.totalorder %s83, %s84
      %p98 = scmp.eq.s32.totalorder %s24, 2
      %p99 = por %p97, %p98
      %p101 = scmp.ne.s32.totalorder %s84, %s100
      %p102 = scmp.eq.s32.totalorder %s24, 0
      %p103 = por %p101, %p102
      %s104 = ssub.s32 %s18, %s25
      %p105 = scmp.eq.s32.totalorder %s104, 0
      %s107 = sadd.s32 %s106, 1
      %s108 = scalar_select %p105, %s106, %s107
      %p111 = pneg %p105
      %p112 = scmp.eq.s32.totalorder %s18, 2
      %p113 = por %p111, %p112
      %p114 = scmp.ne.s32.totalorder %s106, %s109
      %p115 = scmp.eq.s32.totalorder %s18, 0
      %p116 = por %p114, %p115
      %p117 = scmp.ne.s32.totalorder %s106, %s109
      %p118 = scmp.eq.s32.totalorder %s23, 2
      %p119 = por %p117, %p118
      %p120 = scmp.ne.s32.totalorder %s109, %s110
      %p121 = scmp.eq.s32.totalorder %s23, 0
      %p122 = por %p120, %p121
      %p123 = scmp.ne.s32.totalorder %s109, %s110
      %p124 = scmp.eq.s32.totalorder %s24, 2
      %p125 = por %p123, %p124
      %p127 = scmp.ne.s32.totalorder %s110, %s126
      %p128 = scmp.eq.s32.totalorder %s24, 0
      %p129 = por %p127, %p128
      %p130 = scmp.le.s32.totalorder 1, %s18
      %p131 = scmp.lt.s32.totalorder %s18, 4
      %p132 = pnand %p130, %p131
      %p133 = pneg %p132
      // Predicated region
      $region9: #{tpu_custom_call.1} parent=5 // pred_check
        _
      $region10: #{tpu_custom_call.1} parent=5 // pred_check_branch
        %135 = sbr.rel (%p132) target = $region12
      $region11: #{tpu_custom_call.1} parent=5 // pred_region
        %s136 = ssub.s32 %s18, 1
      $region12: #{tpu_custom_call.1} parent=5 // pred_fallthru
        _
      %p137 = scmp.lt.s32.totalorder %s18, 3
      // Predicated region
      $region13: #{tpu_custom_call.1} parent=5 // pred_check
        %p138 = pneg %p137
      $region14: #{tpu_custom_call.1} parent=5 // pred_check_branch
        %140 = sbr.rel (%p138) target = $region16
      $region15: #{tpu_custom_call.1} parent=5 // pred_region
        // Predicated region
        $region17: #{tpu_custom_call.1} parent=15 // pred_check
          %p141 = pneg %p38
        $region18: #{tpu_custom_call.1} parent=15 // pred_check_branch
          %143 = sbr.rel (%p141) target = $region20
        $region19: #{tpu_custom_call.1} parent=15 // pred_region
          %s144 = sand.u32 %s28, 1
          %s145 = scalar_lea.sflag [#allocation3], %s144
          %s146 = sand.u32 %s28, 1
          %s147 = smul.addr %s146, 8
          %s148 = scalar_lea.vmem [#allocation2], %s147
          %s150 = ssub.s32 128, 128
          %151 = vsyncadd %s145, %s150
          %s152 = smul.addr %s18, 128
          %s153 = scalar_lea.hbm %s0, %s152
          %s155 = sshll.u32 %s148, 4
          %s156 = int_to_ptr.vmem [resolvable:$true] %s155
          %158 = dma.hbm_to_vmem [thread:$0]  %s153, 128, %s156, %s145
        $region20: #{tpu_custom_call.1} parent=15 // pred_fallthru
          _
        // Predicated region
        $region21: #{tpu_custom_call.1} parent=15 // pred_check
          %p159 = pneg %p64
        $region22: #{tpu_custom_call.1} parent=15 // pred_check_branch
          %161 = sbr.rel (%p159) target = $region24
        $region23: #{tpu_custom_call.1} parent=15 // pred_region
          %s162 = sand.u32 %s18, 1
          %s163 = scalar_lea.sflag [#allocation6], %s162
          %s164 = sand.u32 %s54, 1
          %s165 = smul.addr %s164, 8
          %s166 = scalar_lea.vmem [#allocation5], %s165
          %s168 = ssub.s32 128, 128
          %169 = vsyncadd %s163, %s168
          %s170 = smul.addr %s18, 128
          %s171 = scalar_lea.hbm %s1, %s170
          %s173 = sshll.u32 %s166, 4
          %s174 = int_to_ptr.vmem [resolvable:$true] %s173
          %176 = dma.hbm_to_vmem [thread:$0]  %s171, 128, %s174, %s163
        $region24: #{tpu_custom_call.1} parent=15 // pred_fallthru
          _
        // Predicated region
        $region25: #{tpu_custom_call.1} parent=15 // pred_check
          %p177 = pneg %p90
        $region26: #{tpu_custom_call.1} parent=15 // pred_check_branch
          %179 = sbr.rel (%p177) target = $region28
        $region27: #{tpu_custom_call.1} parent=15 // pred_region
          %s180 = sand.u32 %s18, 1
          %s181 = scalar_lea.sflag [#allocation6], %s180
          %s182 = sand.u32 %s80, 1
          %s183 = smul.addr %s182, 8
          %s184 = scalar_lea.vmem [#allocation7], %s183
          %s186 = ssub.s32 128, 128
          %187 = vsyncadd %s181, %s186
          %s188 = smul.addr %s18, 128
          %s189 = scalar_lea.hbm %s2, %s188
          %s191 = sshll.u32 %s184, 4
          %s192 = int_to_ptr.vmem [resolvable:$true] %s191
          %194 = dma.hbm_to_vmem [thread:$0]  %s189, 128, %s192, %s181
        $region28: #{tpu_custom_call.1} parent=15 // pred_fallthru
          _
      $region16: #{tpu_custom_call.1} parent=5 // pred_fallthru
        _
      %p195 = scmp.le.s32.totalorder 1, %s18
      %p196 = scmp.lt.s32.totalorder %s18, 4
      %p197 = pnand %p195, %p196
      %p198 = pneg %p197
      // Predicated region
      $region29: #{tpu_custom_call.1} parent=5 // pred_check
        _
      $region30: #{tpu_custom_call.1} parent=5 // pred_check_branch
        %200 = sbr.rel (%p197) target = $region32
      $region31: #{tpu_custom_call.1} parent=5 // pred_region
        %s201 = ssub.s32 %s18, 1
        %s202 = sand.u32 %s31, 1
        %s203 = scalar_lea.sflag [#allocation3], %s202
        %s204 = sand.u32 %s31, 1
        %s205 = smul.addr %s204, 8
        %s206 = scalar_lea.vmem [#allocation2], %s205
        // Predicated region
        $region33: #{tpu_custom_call.1} parent=31 // pred_check
          %p207 = pneg %p44
        $region34: #{tpu_custom_call.1} parent=31 // pred_check_branch
          %209 = sbr.rel (%p207) target = $region36
        $region35: #{tpu_custom_call.1} parent=31 // pred_region
          %210 = dma.done %s203, 128
        $region36: #{tpu_custom_call.1} parent=31 // pred_fallthru
          _
        %s211 = sand.u32 %s23, 1
        %s212 = scalar_lea.sflag [#allocation6], %s211
        %s213 = sand.u32 %s57, 1
        %s214 = smul.addr %s213, 8
        %s215 = scalar_lea.vmem [#allocation5], %s214
        // Predicated region
        $region37: #{tpu_custom_call.1} parent=31 // pred_check
          %p216 = pneg %p70
        $region38: #{tpu_custom_call.1} parent=31 // pred_check_branch
          %218 = sbr.rel (%p216) target = $region40
        $region39: #{tpu_custom_call.1} parent=31 // pred_region
          %219 = dma.done %s212, 128
        $region40: #{tpu_custom_call.1} parent=31 // pred_fallthru
          _
        %s220 = sand.u32 %s23, 1
        %s221 = scalar_lea.sflag [#allocation6], %s220
        %s222 = sand.u32 %s83, 1
        %s223 = smul.addr %s222, 8
        %s224 = scalar_lea.vmem [#allocation7], %s223
        // Predicated region
        $region41: #{tpu_custom_call.1} parent=31 // pred_check
          %p225 = pneg %p96
        $region42: #{tpu_custom_call.1} parent=31 // pred_check_branch
          %227 = sbr.rel (%p225) target = $region44
        $region43: #{tpu_custom_call.1} parent=31 // pred_region
          %228 = dma.done %s221, 128
        $region44: #{tpu_custom_call.1} parent=31 // pred_fallthru
          _
        %s229 = sand.u32 %s31, 1
        %s230 = scalar_lea.sflag [#allocation3], %s229
        %s231 = sand.u32 %s31, 1
        %s232 = smul.addr %s231, 8
        %s233 = scalar_lea.vmem [#allocation2], %s232
        %p234 = pneg %p44
        %p235 = pneg %p41
        %s236 = sand.u32 %s23, 1
        %s237 = scalar_lea.sflag [#allocation6], %s236
        %s238 = sand.u32 %s57, 1
        %s239 = smul.addr %s238, 8
        %s240 = scalar_lea.vmem [#allocation5], %s239
        %p241 = pneg %p70
        %p242 = pneg %p67
        %s243 = sand.u32 %s23, 1
        %s244 = scalar_lea.sflag [#allocation6], %s243
        %s245 = sand.u32 %s83, 1
        %s246 = smul.addr %s245, 8
        %s247 = scalar_lea.vmem [#allocation7], %s246
        %p248 = pneg %p96
        %p249 = pneg %p93
        %p250 = pneg %p122
        %p251 = pneg %p119
        %s252 = sand.u32 %s109, 1
        %s253 = scalar_lea.sflag [#allocation4], %s252
        %s254 = sand.u32 %s109, 1
        %s255 = scalar_lea.vmem [#allocation8], %s254
        %v256 = vld [vmem:[%s206] sm:$0xff]
        %v257 = vld [vmem:[%s215] sm:$0xff]
        %v258 = vld [vmem:[%s224] sm:$0xff]
        %v259 = vmul.f32 %v256, %v256
        %260 = vadd.xlane.f32.xlu0 %v259
        %v261 = vpop.xlane.xlu0 %260
        %v262 = vmax.f32 %v261, 1e-24
        %v263 = vrsqrt.pop %v262
        %v264 = vmul.f32 %v256, %v263
        %vm265 = vcmask 64512
        %v267 = vsel %vm265, %v257, 0
        %269 = vmatprep.subr.mxu0 0.0
        %270 = vmatpush1.msra.mxu0 %v264
        %271 = vmatprep.subr.mxu0 0.0
        %272 = vmatpush1.msra.mxu0 0.0
        %273 = vmatprep.subr.mxu0 0.0
        %274 = vmatpush1.msra.mxu0 0.0
        %275 = vmatprep.subr.mxu0 0.0
        %276 = vmatpush1.msra.mxu0 0.0
        %277 = vmatprep.subr.mxu0 0.0
        %278 = vmatpush1.msra.mxu0 0.0
        %279 = vmatprep.subr.mxu0 0.0
        %280 = vmatpush1.msra.mxu0 0.0
        %281 = vmatprep.subr.mxu0 0.0
        %282 = vmatpush1.msra.mxu0 0.0
        %283 = vmatprep.subr.mxu0 0.0
        %284 = vmatpush1.msra.mxu0 0.0
        %285 = vmatprep.subr.mxu0 0.0
        %286 = vmatpush1.msra.mxu0 0.0
        %287 = vmatprep.subr.mxu0 0.0
        %288 = vmatpush1.msra.mxu0 0.0
        %289 = vmatprep.subr.mxu0 0.0
        %290 = vmatpush1.msra.mxu0 0.0
        %291 = vmatprep.subr.mxu0 0.0
        %292 = vmatpush1.msra.mxu0 0.0
        %293 = vmatprep.subr.mxu0 0.0
        %294 = vmatpush1.msra.mxu0 0.0
        %295 = vmatprep.subr.mxu0 0.0
        %296 = vmatpush1.msra.mxu0 0.0
        %297 = vmatprep.subr.mxu0 0.0
        %298 = vmatpush1.msra.mxu0 0.0
        %299 = vmatprep.subr.mxu0 0.0
        %300 = vmatpush1.msra.mxu0 0.0
        %301 = vmatprep.subr.mxu0 0.0
        %302 = vmatpush1.msra.mxu0 0.0
        %303 = vmatprep.subr.mxu0 0.0
        %304 = vmatpush1.msra.mxu0 0.0
        %305 = vmatprep.subr.mxu0 0.0
        %306 = vmatpush1.msra.mxu0 0.0
        %307 = vmatprep.subr.mxu0 0.0
        %308 = vmatpush1.msra.mxu0 0.0
        %309 = vmatprep.subr.mxu0 0.0
        %310 = vmatpush1.msra.mxu0 0.0
        %311 = vmatprep.subr.mxu0 0.0
        %312 = vmatpush1.msra.mxu0 0.0
        %313 = vmatprep.subr.mxu0 0.0
        %314 = vmatpush1.msra.mxu0 0.0
        %315 = vmatprep.subr.mxu0 0.0
        %316 = vmatpush1.msra.mxu0 0.0
        %317 = vmatprep.subr.mxu0 0.0
        %318 = vmatpush1.msra.mxu0 0.0
        %319 = vmatprep.subr.mxu0 0.0
        %320 = vmatpush1.msra.mxu0 0.0
        %321 = vmatprep.subr.mxu0 0.0
        %322 = vmatpush1.msra.mxu0 0.0
        %323 = vmatprep.subr.mxu0 0.0
        %324 = vmatpush1.msra.mxu0 0.0
        %325 = vmatprep.subr.mxu0 0.0
        %326 = vmatpush1.msra.mxu0 0.0
        %327 = vmatprep.subr.mxu0 0.0
        %328 = vmatpush1.msra.mxu0 0.0
        %329 = vmatprep.subr.mxu0 0.0
        %330 = vmatpush1.msra.mxu0 0.0
        %331 = vmatprep.subr.mxu0 0.0
        %332 = vmatpush1.msra.mxu0 0.0
        %333 = vmatprep.mubr.f32.mxu0 0.0
        %334 = vmatmul.mubr.f32.gmra.mrb[0].mxu0 %v267
        %v335 = vpop.f32.mrb[0].mxu0
        %v336 = vadd.f32 0.0, %v335
        %v337 = vpop.f32.mrb[0].mxu0
        %338 = vdwg.mxu0
        %v339 = vlaneseq
        %v340 = vand.u32 %v339, 127
        %vm341 = vcmp.lt.s32.totalorder %v340, 32
        %v342 = vsel %vm341, 1e-06, 0.0
        %v344 = vcombine.high %v336, %v336
        %v346 = vunpack.c.l.s4 1966171168
        %v347 = vunpack.c.0.s8 %v346
        %v348 = vlaneseq
        %v349 = vshrl.u32 %v348, 7
        %v350 = vsub.s32 %v347, %v349
        %v351 = vrot.slane %v336, %v350
        %v353 = vunpack.c.l.s4 1966171168
        %v354 = vunpack.c.0.s8 %v353
        %v355 = vlaneseq
        %v356 = vshrl.u32 %v355, 7
        %v357 = vsub.s32 %v354, %v356
        %v358 = vrot.slane %v344, %v357
        %v359 = vcombine.high %v351, %v351
        %v360 = vcombine.high %v358, %v358
        %v362 = vunpack.c.l.s4 1966171168
        %v363 = vunpack.c.0.s8 %v362
        %v364 = vlaneseq
        %v365 = vshrl.u32 %v364, 7
        %v366 = vsub.s32 %v363, %v365
        %v367 = vrot.slane %v351, %v366
        %v369 = vunpack.c.l.s4 1966171168
        %v370 = vunpack.c.0.s8 %v369
        %v371 = vlaneseq
        %v372 = vshrl.u32 %v371, 7
        %v373 = vsub.s32 %v370, %v372
        %v374 = vrot.slane %v358, %v373
        %v376 = vunpack.c.l.s4 1966171168
        %v377 = vunpack.c.0.s8 %v376
        %v378 = vlaneseq
        %v379 = vshrl.u32 %v378, 7
        %v380 = vsub.s32 %v377, %v379
        %v381 = vrot.slane %v359, %v380
        %v383 = vunpack.c.l.s4 1966171168
        %v384 = vunpack.c.0.s8 %v383
        %v385 = vlaneseq
        %v386 = vshrl.u32 %v385, 7
        %v387 = vsub.s32 %v384, %v386
        %v388 = vrot.slane %v360, %v387
        %v389 = vcombine.high %v367, %v367
        %v390 = vcombine.high %v374, %v374
        %v391 = vcombine.high %v381, %v381
        %v392 = vcombine.high %v388, %v388
        %v393 = vlaneseq
        %v394 = vshrl.u32 %v393, 7
        %v395 = vsub.s32 0, %v394
        %v396 = vrot.slane %v367, %v395
        %v397 = vlaneseq
        %v398 = vshrl.u32 %v397, 7
        %v399 = vsub.s32 0, %v398
        %v400 = vrot.slane %v381, %v399
        %v401 = vlaneseq
        %v402 = vshrl.u32 %v401, 7
        %v403 = vsub.s32 0, %v402
        %v404 = vrot.slane %v389, %v403
        %v405 = vlaneseq
        %v406 = vshrl.u32 %v405, 7
        %v407 = vsub.s32 0, %v406
        %v408 = vrot.slane %v391, %v407
        %v409 = vlaneseq
        %v410 = vshrl.u32 %v409, 7
        %v411 = vsub.s32 0, %v410
        %v412 = vrot.slane %v374, %v411
        %v413 = vlaneseq
        %v414 = vshrl.u32 %v413, 7
        %v415 = vsub.s32 0, %v414
        %v416 = vrot.slane %v388, %v415
        %v417 = vlaneseq
        %v418 = vshrl.u32 %v417, 7
        %v419 = vsub.s32 0, %v418
        %v420 = vrot.slane %v390, %v419
        %v421 = vlaneseq
        %v422 = vshrl.u32 %v421, 7
        %v423 = vsub.s32 0, %v422
        %v424 = vrot.slane %v392, %v423
        %v433 = vsub.f32 %v264, %v396
        %v434 = vsub.f32 %v264, %v400
        %v435 = vsub.f32 %v264, %v404
        %v436 = vsub.f32 %v264, %v408
        %v437 = vsub.f32 %v264, %v412
        %v438 = vsub.f32 %v264, %v416
        %v439 = vsub.f32 %v264, %v420
        %v440 = vsub.f32 %v264, %v424
        %v441 = vadd.f32 %v433, %v342
        %v442 = vadd.f32 %v434, %v342
        %v443 = vadd.f32 %v435, %v342
        %v444 = vadd.f32 %v436, %v342
        %v445 = vadd.f32 %v437, %v342
        %v446 = vadd.f32 %v438, %v342
        %v447 = vadd.f32 %v439, %v342
        %v448 = vadd.f32 %v440, %v342
        %v449 = vmul.f32 %v441, %v441
        %v450 = vmul.f32 %v442, %v442
        %v451 = vmul.f32 %v443, %v443
        %v452 = vmul.f32 %v444, %v444
        %v453 = vmul.f32 %v445, %v445
        %v454 = vmul.f32 %v446, %v446
        %v455 = vmul.f32 %v447, %v447
        %v456 = vmul.f32 %v448, %v448
        %457 = vadd.xlane.f32.xlu0 %v449
        %v458 = vpop.xlane.xlu0 %457
        %459 = vadd.xlane.f32.xlu0 %v450
        %v460 = vpop.xlane.xlu0 %459
        %461 = vadd.xlane.f32.xlu0 %v451
        %v462 = vpop.xlane.xlu0 %461
        %463 = vadd.xlane.f32.xlu0 %v452
        %v464 = vpop.xlane.xlu0 %463
        %465 = vadd.xlane.f32.xlu0 %v453
        %v466 = vpop.xlane.xlu0 %465
        %467 = vadd.xlane.f32.xlu0 %v454
        %v468 = vpop.xlane.xlu0 %467
        %469 = vadd.xlane.f32.xlu0 %v455
        %v470 = vpop.xlane.xlu0 %469
        %471 = vadd.xlane.f32.xlu0 %v456
        %v472 = vpop.xlane.xlu0 %471
        %v473 = vrsqrt.pop %v458
        %v474 = vmul.f32 %v458, %v473
        %vm475 = vcmp.eq.f32.partialorder %v458, inf
        %v476 = vsel %vm475, %v458, %v474
        %vm477 = vcmp.eq.f32.partialorder %v458, 0.0
        %v478 = vand.u32 %v458, 2147483648
        %v479 = vsel %vm477, %v478, %v476
        %v480 = vrsqrt.pop %v460
        %v481 = vmul.f32 %v460, %v480
        %vm482 = vcmp.eq.f32.partialorder %v460, inf
        %v483 = vsel %vm482, %v460, %v481
        %vm484 = vcmp.eq.f32.partialorder %v460, 0.0
        %v485 = vand.u32 %v460, 2147483648
        %v486 = vsel %vm484, %v485, %v483
        %v487 = vrsqrt.pop %v462
        %v488 = vmul.f32 %v462, %v487
        %vm489 = vcmp.eq.f32.partialorder %v462, inf
        %v490 = vsel %vm489, %v462, %v488
        %vm491 = vcmp.eq.f32.partialorder %v462, 0.0
        %v492 = vand.u32 %v462, 2147483648
        %v493 = vsel %vm491, %v492, %v490
        %v494 = vrsqrt.pop %v464
        %v495 = vmul.f32 %v464, %v494
        %vm496 = vcmp.eq.f32.partialorder %v464, inf
        %v497 = vsel %vm496, %v464, %v495
        %vm498 = vcmp.eq.f32.partialorder %v464, 0.0
        %v499 = vand.u32 %v464, 2147483648
        %v500 = vsel %vm498, %v499, %v497
        %v501 = vrsqrt.pop %v466
        %v502 = vmul.f32 %v466, %v501
        %vm503 = vcmp.eq.f32.partialorder %v466, inf
        %v504 = vsel %vm503, %v466, %v502
        %vm505 = vcmp.eq.f32.partialorder %v466, 0.0
        %v506 = vand.u32 %v466, 2147483648
        %v507 = vsel %vm505, %v506, %v504
        %v508 = vrsqrt.pop %v468
        %v509 = vmul.f32 %v468, %v508
        %vm510 = vcmp.eq.f32.partialorder %v468, inf
        %v511 = vsel %vm510, %v468, %v509
        %vm512 = vcmp.eq.f32.partialorder %v468, 0.0
        %v513 = vand.u32 %v468, 2147483648
        %v514 = vsel %vm512, %v513, %v511
        %v515 = vrsqrt.pop %v470
        %v516 = vmul.f32 %v470, %v515
        %vm517 = vcmp.eq.f32.partialorder %v470, inf
        %v518 = vsel %vm517, %v470, %v516
        %vm519 = vcmp.eq.f32.partialorder %v470, 0.0
        %v520 = vand.u32 %v470, 2147483648
        %v521 = vsel %vm519, %v520, %v518
        %v522 = vrsqrt.pop %v472
        %v523 = vmul.f32 %v472, %v522
        %vm524 = vcmp.eq.f32.partialorder %v472, inf
        %v525 = vsel %vm524, %v472, %v523
        %vm526 = vcmp.eq.f32.partialorder %v472, 0.0
        %v527 = vand.u32 %v472, 2147483648
        %v528 = vsel %vm526, %v527, %v525
        %v529 = vand.u32 2147483647, %v441
        %v530 = vand.u32 2147483647, %v442
        %v531 = vand.u32 2147483647, %v443
        %v532 = vand.u32 2147483647, %v444
        %v533 = vand.u32 2147483647, %v445
        %v534 = vand.u32 2147483647, %v446
        %v535 = vand.u32 2147483647, %v447
        %v536 = vand.u32 2147483647, %v448
        %537 = vadd.xlane.f32.xlu0 %v529
        %v538 = vpop.xlane.xlu0 %537
        %539 = vadd.xlane.f32.xlu0 %v530
        %v540 = vpop.xlane.xlu0 %539
        %541 = vadd.xlane.f32.xlu0 %v531
        %v542 = vpop.xlane.xlu0 %541
        %543 = vadd.xlane.f32.xlu0 %v532
        %v544 = vpop.xlane.xlu0 %543
        %545 = vadd.xlane.f32.xlu0 %v533
        %v546 = vpop.xlane.xlu0 %545
        %547 = vadd.xlane.f32.xlu0 %v534
        %v548 = vpop.xlane.xlu0 %547
        %549 = vadd.xlane.f32.xlu0 %v535
        %v550 = vpop.xlane.xlu0 %549
        %551 = vadd.xlane.f32.xlu0 %v536
        %v552 = vpop.xlane.xlu0 %551
        %v553 = vsub.f32 8.0, %v538
        %v554 = vsub.f32 8.0, %v540
        %v555 = vsub.f32 8.0, %v542
        %v556 = vsub.f32 8.0, %v544
        %v557 = vsub.f32 8.0, %v546
        %v558 = vsub.f32 8.0, %v548
        %v559 = vsub.f32 8.0, %v550
        %v560 = vsub.f32 8.0, %v552
        %v561 = vmax.f32 %v553, 0.0
        %v562 = vmax.f32 %v554, 0.0
        %v563 = vmax.f32 %v555, 0.0
        %v564 = vmax.f32 %v556, 0.0
        %v565 = vmax.f32 %v557, 0.0
        %v566 = vmax.f32 %v558, 0.0
        %v567 = vmax.f32 %v559, 0.0
        %v568 = vmax.f32 %v560, 0.0
        %v577 = vlaneseq
        %v578 = vshrl.u32 %v577, 7
        %v579 = vsub.s32 %v340, %v578
        %v580 = vrot.slane %v479, %v579
        %v581 = vlaneseq
        %v582 = vshrl.u32 %v581, 7
        %v583 = vsub.s32 %v340, %v582
        %v584 = vrot.slane %v486, %v583
        %v585 = vlaneseq
        %v586 = vshrl.u32 %v585, 7
        %v587 = vsub.s32 %v340, %v586
        %v588 = vrot.slane %v493, %v587
        %v589 = vlaneseq
        %v590 = vshrl.u32 %v589, 7
        %v591 = vsub.s32 %v340, %v590
        %v592 = vrot.slane %v500, %v591
        %v593 = vlaneseq
        %v594 = vshrl.u32 %v593, 7
        %v595 = vsub.s32 %v340, %v594
        %v596 = vrot.slane %v507, %v595
        %v597 = vlaneseq
        %v598 = vshrl.u32 %v597, 7
        %v599 = vsub.s32 %v340, %v598
        %v600 = vrot.slane %v514, %v599
        %v601 = vlaneseq
        %v602 = vshrl.u32 %v601, 7
        %v603 = vsub.s32 %v340, %v602
        %v604 = vrot.slane %v521, %v603
        %v605 = vlaneseq
        %v606 = vshrl.u32 %v605, 7
        %v607 = vsub.s32 %v340, %v606
        %v608 = vrot.slane %v528, %v607
        %vm609 = vcmask 1041409
        %v610 = vsel %vm609, %v584, %v580
        %vm611 = vcmask 1042434
        %v612 = vsel %vm611, %v588, %v610
        %vm613 = vcmask 1043459
        %v614 = vsel %vm613, %v592, %v612
        %vm615 = vcmask 1044484
        %v616 = vsel %vm615, %v596, %v614
        %vm617 = vcmask 1045509
        %v618 = vsel %vm617, %v600, %v616
        %vm619 = vcmask 1046534
        %v620 = vsel %vm619, %v604, %v618
        %vm621 = vcmask 1047559
        %v622 = vsel %vm621, %v608, %v620
        %v624 = vmul.f32 %v257, %v622
        %v625 = vsel %vm265, %v624, 0.0
        %626 = vadd.xlane.f32.xlu0 %v625
        %v627 = vpop.xlane.xlu0 %626
        %v628 = vrot.slane %v627, 4
        %v629 = vadd.f32 %v627, %v628
        %v630 = vrot.slane %v629, 2
        %v631 = vadd.f32 %v629, %v630
        %v632 = vrot.slane %v631, 1
        %v633 = vadd.f32 %v631, %v632
        %s634 = vtos %v633
        %v643 = vlaneseq
        %v644 = vshrl.u32 %v643, 7
        %v645 = vsub.s32 %v340, %v644
        %v646 = vrot.slane %v561, %v645
        %v647 = vlaneseq
        %v648 = vshrl.u32 %v647, 7
        %v649 = vsub.s32 %v340, %v648
        %v650 = vrot.slane %v562, %v649
        %v651 = vlaneseq
        %v652 = vshrl.u32 %v651, 7
        %v653 = vsub.s32 %v340, %v652
        %v654 = vrot.slane %v563, %v653
        %v655 = vlaneseq
        %v656 = vshrl.u32 %v655, 7
        %v657 = vsub.s32 %v340, %v656
        %v658 = vrot.slane %v564, %v657
        %v659 = vlaneseq
        %v660 = vshrl.u32 %v659, 7
        %v661 = vsub.s32 %v340, %v660
        %v662 = vrot.slane %v565, %v661
        %v663 = vlaneseq
        %v664 = vshrl.u32 %v663, 7
        %v665 = vsub.s32 %v340, %v664
        %v666 = vrot.slane %v566, %v665
        %v667 = vlaneseq
        %v668 = vshrl.u32 %v667, 7
        %v669 = vsub.s32 %v340, %v668
        %v670 = vrot.slane %v567, %v669
        %v671 = vlaneseq
        %v672 = vshrl.u32 %v671, 7
        %v673 = vsub.s32 %v340, %v672
        %v674 = vrot.slane %v568, %v673
        %v675 = vsel %vm609, %v650, %v646
        %v676 = vsel %vm611, %v654, %v675
        %v677 = vsel %vm613, %v658, %v676
        %v678 = vsel %vm615, %v662, %v677
        %v679 = vsel %vm617, %v666, %v678
        %v680 = vsel %vm619, %v670, %v679
        %v681 = vsel %vm621, %v674, %v680
        %v683 = vmul.f32 %v258, %v681
        %v684 = vsel %vm265, %v683, 0.0
        %685 = vadd.xlane.f32.xlu0 %v684
        %v686 = vpop.xlane.xlu0 %685
        %v687 = vrot.slane %v686, 4
        %v688 = vadd.f32 %v686, %v687
        %v689 = vrot.slane %v688, 2
        %v690 = vadd.f32 %v688, %v689
        %v691 = vrot.slane %v690, 1
        %v692 = vadd.f32 %v690, %v691
        %s693 = vtos %v692
        %vm694 = vcmp.eq.s32.totalorder %v340, 0
        %v695 = vstv %s634
        %v696 = vsel %vm694, %v695, 0.0
        %vm697 = vcmp.eq.s32.totalorder %v340, 1
        %v698 = vstv %s693
        %v699 = vsel %vm697, %v698, 0.0
        %v700 = vadd.f32 %v696, %v699
        %701 = vst [vmem:[%s255] sm:$0x1] %v700
        %s702 = sand.u32 %s109, 1
        %s703 = scalar_lea.sflag [#allocation4], %s702
        %s704 = sand.u32 %s109, 1
        %s705 = scalar_lea.vmem [#allocation8], %s704
        // Predicated region
        $region45: #{tpu_custom_call.1} parent=31 // pred_check
          %p706 = pneg %p119
        $region46: #{tpu_custom_call.1} parent=31 // pred_check_branch
          %708 = sbr.rel (%p706) target = $region48
        $region47: #{tpu_custom_call.1} parent=31 // pred_region
          %s710 = ssub.s32 16, 16
          %711 = vsyncadd %s703, %s710
          %s712 = smul.addr %s23, 16
          %s713 = scalar_lea.hbm %s3, %s712
          %s715 = sshll.u32 %s705, 4
          %s716 = int_to_ptr.vmem [resolvable:$true] %s715
          %718 = dma.vmem_to_hbm [thread:$0]  %s716, 16, %s713, %s703
        $region48: #{tpu_custom_call.1} parent=31 // pred_fallthru
          _
      $region32: #{tpu_custom_call.1} parent=5 // pred_fallthru
        _
      %p719 = scmp.le.s32.totalorder 2, %s18
      // Predicated region
      $region49: #{tpu_custom_call.1} parent=5 // pred_check
        %p720 = pneg %p719
      $region50: #{tpu_custom_call.1} parent=5 // pred_check_branch
        %722 = sbr.rel (%p720) target = $region52
      $region51: #{tpu_custom_call.1} parent=5 // pred_region
        %s723 = ssub.s32 %s18, 2
        // Predicated region
        $region53: #{tpu_custom_call.1} parent=51 // pred_check
          %p724 = pneg %p125
        $region54: #{tpu_custom_call.1} parent=51 // pred_check_branch
          %726 = sbr.rel (%p724) target = $region56
        $region55: #{tpu_custom_call.1} parent=51 // pred_region
          %s727 = sand.u32 %s110, 1
          %s728 = scalar_lea.sflag [#allocation4], %s727
          %s729 = sand.u32 %s110, 1
          %s730 = scalar_lea.vmem [#allocation8], %s729
          %731 = dma.done %s728, 16
        $region56: #{tpu_custom_call.1} parent=51 // pred_fallthru
          _
      $region52: #{tpu_custom_call.1} parent=5 // pred_fallthru
        _
    $region6: #{tpu_custom_call.1} parent=1 // loop_footer
      %s22 = sadd.s32 1, %s18
    $region7: #{tpu_custom_call.1} parent=1 // loop_footer_branch
      %17 = sbr.rel target = $region3
    $region8: #{tpu_custom_call.1} parent=1 // loop_exit
      _
    %732 = vsyncpa [#allocation3], 1
    %s733 = scalar_lea.sflag [#allocation3], 1
    %734 = vsyncpa %s733, 1
    %735 = vsyncpa [#allocation6], 1
    %s736 = scalar_lea.sflag [#allocation6], 1
    %737 = vsyncpa %s736, 1
    %738 = vsyncpa [#allocation4], 1
    %s739 = scalar_lea.sflag [#allocation4], 1
    %740 = vsyncpa %s739, 1

</llo_original>
